<compile_context>
chip_gen: v7x
topology: tpu7x:2x2x1
jax: 0.10.0
libtpu: 0.0.40
codegen_flags: <defaults>
</compile_context>

<pallas_src>
import functools

import jax
import jax.numpy as jnp
from jax import lax
from jax.experimental import pallas as pl
from jax.experimental.pallas import tpu as pltpu


def _round_up(x, m):
    return (x + m - 1) // m * m


def _pad2(a, rows, cols):
    out = jnp.zeros((rows, cols), a.dtype)
    return out.at[: a.shape[0], : a.shape[1]].set(a)


def _pad1(a, n):
    out = jnp.zeros((n,), a.dtype)
    return out.at[: a.shape[0]].set(a)


# ----------------------------------------------------------------------------
# Fused kernel: lin_node (Linear+SiLU) + global_add_pool + FC head.
#   grid axis = node chunks (reduction, "arbitrary"):
#     y        = SiLU(x_chunk @ W_node + b_node)          (bf16 MXU, f32 act math)
#     emb_acc += one_hot(batch_chunk) @ y                 (bf16 MXU, f32 accumulate)
#   on the last chunk, run the whole FC head out of VMEM:
#     3x [Linear -> LeakyReLU -> BN(eval, folded to scale/shift)] -> Linear(->tasks)
# Padded node rows carry segment id -1 so they never contribute; padded graph rows /
# feature lanes stay exactly zero through the whole head and are sliced off outside.
# ----------------------------------------------------------------------------
def _dtign_fused_kernel(seg_ref, x_ref, wn_ref, bn_ref, ws_ref, bs_ref,
                        sc_ref, sh_ref, wo_ref, bo_ref, o_ref, emb_acc, *, num_fc):
    k = pl.program_id(0)

    @pl.when(k == 0)
    def _():
        emb_acc[...] = jnp.zeros_like(emb_acc)

    g_pad = emb_acc.shape[0]
    tn = x_ref.shape[0]

    # ---- lin_node: SiLU(x @ W_node + b_node), fused per node chunk ----------
    y = jnp.dot(x_ref[...].astype(jnp.bfloat16), wn_ref[...],
                preferred_element_type=jnp.float32)
    y = y + bn_ref[...]
    y = y * jax.nn.sigmoid(y)            # SiLU in f32 (EUP sigmoid; no bf16 VPU/EUP on v5e)

    # ---- gconv: identity (HIL undefined in source) ---------------------------

    # ---- global_add_pool: one-hot segment matmul -----------------------------
    seg = seg_ref[...]                                       # (1, tn) int32
    gid = lax.broadcasted_iota(jnp.int32, (g_pad, tn), 0)    # (g_pad, tn)
    onehot = (gid == seg).astype(jnp.bfloat16)               # padded nodes (seg=-1) -> 0
    emb_acc[...] += jnp.dot(onehot, y.astype(jnp.bfloat16),
                            preferred_element_type=jnp.float32)

    # ---- FC head epilogue (last chunk only), entirely in VMEM ---------------
    @pl.when(k == pl.num_programs(0) - 1)
    def _():
        row_blk = min(g_pad, 256)                            # guard against vreg spills
        for r0 in range(0, g_pad, row_blk):                  # static unroll
            blk = min(row_blk, g_pad - r0)
            h = emb_acc[r0:r0 + blk, :]                      # (blk, h_pad) f32
            for j in range(num_fc):                          # static unroll
                z = jnp.dot(h.astype(jnp.bfloat16), ws_ref[j],
                            preferred_element_type=jnp.float32)
                z = z + bs_ref[j:j + 1, :]
                z = jnp.where(z >= 0.0, z, 0.01 * z)         # LeakyReLU(0.01), f32
                h = z * sc_ref[j:j + 1, :] + sh_ref[j:j + 1, :]  # eval-mode BatchNorm1d
            out = jnp.dot(h.astype(jnp.bfloat16), wo_ref[...],
                          preferred_element_type=jnp.float32) + bo_ref[...]
            o_ref[r0:r0 + blk, :] = out.astype(o_ref.dtype)  # lane-dense (blk, 128) store


def dtign_fused(batch_pad, x_pad, wn, bn, ws, bs, scales, shifts, wo, bo,
                *, g_pad, tn, num_fc):
    n_pad, d_node = x_pad.shape
    h_pad = wn.shape[1]
    t_pad = wo.shape[1]
    return pl.pallas_call(
        functools.partial(_dtign_fused_kernel, num_fc=num_fc),
        out_shape=jax.ShapeDtypeStruct((g_pad, t_pad), jnp.float32),
        grid=(n_pad // tn,),
        in_specs=[
            pl.BlockSpec((1, tn), lambda k: (0, k)),                  # batch ids (chunked)
            pl.BlockSpec((tn, d_node), lambda k: (k, 0)),             # raw node features (f32)
            pl.BlockSpec((d_node, h_pad), lambda k: (0, 0)),          # W_node (bf16)
            pl.BlockSpec((1, h_pad), lambda k: (0, 0)),               # b_node (f32)
            pl.BlockSpec((num_fc, h_pad, h_pad), lambda k: (0, 0, 0)),
            pl.BlockSpec((num_fc, h_pad), lambda k: (0, 0)),
            pl.BlockSpec((num_fc, h_pad), lambda k: (0, 0)),
            pl.BlockSpec((num_fc, h_pad), lambda k: (0, 0)),
            pl.BlockSpec((h_pad, t_pad), lambda k: (0, 0)),
            pl.BlockSpec((1, t_pad), lambda k: (0, 0)),
        ],
        out_specs=pl.BlockSpec((g_pad, t_pad), lambda k: (0, 0)),     # resident output tile
        scratch_shapes=[pltpu.VMEM((g_pad, h_pad), jnp.float32)],     # pooled-graph accumulator
        compiler_params=pltpu.CompilerParams(dimension_semantics=("arbitrary",)),
    )(batch_pad, x_pad, wn, bn, ws, bs, scales, shifts, wo, bo)


# ----------------------------------------------------------------------------
# Parameter construction (deterministic, matches nn.Linear / BatchNorm1d init)
# ----------------------------------------------------------------------------
def init_params(key, node_dim, bond_dim, hidden_dim, fc_layer, task_num):
    n_keys = 4 + 2 * fc_layer + 2
    ks = jax.random.split(key, n_keys)
    ki = iter(range(n_keys))

    def lin(k_w, k_b, din, dout):
        bound = din ** -0.5
        w = jax.random.uniform(k_w, (din, dout), jnp.float32, -bound, bound)
        b = jax.random.uniform(k_b, (dout,), jnp.float32, -bound, bound)
        return w, b

    p = {}
    p["w_node"], p["b_node"] = lin(ks[next(ki)], ks[next(ki)], node_dim, hidden_dim)
    # lin_bond exists in the module but only feeds the (unavailable) HIL layers -> unused here.
    p["w_bond"], p["b_bond"] = lin(ks[next(ki)], ks[next(ki)], bond_dim, hidden_dim)

    p["fc"] = []
    d_in = hidden_dim  # embedding_num * hidden_dim with embedding_num = 1
    for _ in range(fc_layer):
        w, b = lin(ks[next(ki)], ks[next(ki)], d_in, hidden_dim)
        p["fc"].append(dict(
            w=w, b=b,
            gamma=jnp.ones((hidden_dim,), jnp.float32),
            beta=jnp.zeros((hidden_dim,), jnp.float32),
            mean=jnp.zeros((hidden_dim,), jnp.float32),   # running stats (eval mode)
            var=jnp.ones((hidden_dim,), jnp.float32)))
        d_in = hidden_dim
    p["w_out"], p["b_out"] = lin(ks[next(ki)], ks[next(ki)], hidden_dim, task_num)
    return p


def prepare_padded_params(params, node_dim, hidden_dim, task_num):
    """Pad hidden/task feature dims to 128 lanes (node features only to a sublane
    multiple of 8), cast matmul operands to bf16, fold eval-mode BatchNorm into
    per-feature scale/shift."""
    d_node_pad = _round_up(node_dim, 8)
    h_pad = _round_up(hidden_dim, 128)
    t_pad = _round_up(task_num, 128)
    eps = 1e-5

    prep = {
        "d_node_pad": d_node_pad, "h_pad": h_pad, "t_pad": t_pad,
        "node_dim": node_dim, "task_num": task_num, "num_fc": len(params["fc"]),
        "w_node": _pad2(params["w_node"], d_node_pad, h_pad).astype(jnp.bfloat16),
        "b_node": _pad1(params["b_node"], h_pad).reshape(1, h_pad).astype(jnp.float32),
        "w_out": _pad2(params["w_out"], h_pad, t_pad).astype(jnp.bfloat16),
        "b_out": _pad1(params["b_out"], t_pad).reshape(1, t_pad).astype(jnp.float32),
    }
    ws, bs, scales, shifts = [], [], [], []
    for layer in params["fc"]:
        scale = layer["gamma"] / jnp.sqrt(layer["var"] + eps)
        shift = layer["beta"] - layer["mean"] * scale
        ws.append(_pad2(layer["w"], h_pad, h_pad))
        bs.append(_pad1(layer["b"], h_pad))
        scales.append(_pad1(scale, h_pad))
        shifts.append(_pad1(shift, h_pad))
    prep["ws"] = jnp.stack(ws).astype(jnp.bfloat16)
    prep["bs"] = jnp.stack(bs).astype(jnp.float32)
    prep["scales"] = jnp.stack(scales).astype(jnp.float32)
    prep["shifts"] = jnp.stack(shifts).astype(jnp.float32)
    return prep


# ----------------------------------------------------------------------------
# DTIGN forward
# ----------------------------------------------------------------------------
def dtign_forward(prep, init_x, init_x_bond, batch, num_graphs):
    # TODO(synk): x_bond = lin_bond(init_x_bond) and the 3 HIL gconv layers are omitted —
    # HIL is not defined in the provided source, so gconv is identity and x_bond is dead.
    del init_x_bond

    n = init_x.shape[0]
    d_node_pad = prep["d_node_pad"]

    # Rows padded only to a multiple of 128; pick the largest 128-multiple row tile
    # <= 1024 that divides n_pad (amortizes per-grid-step overhead, no tn-1 dead rows).
    n_pad = _round_up(n, 128)
    blocks = n_pad // 128
    max_m = min(1024 // 128, blocks)
    m = max(d for d in range(1, max_m + 1) if blocks % d == 0)
    tn = 128 * m

    g_pad = _round_up(max(num_graphs, 8), 8)

    # Small row/feature pad only (<=127 rows, <=7 cols); features stay in natural f32
    # width — the bf16 cast and 128-lane expansion happen inside the kernel.
    if (n, init_x.shape[1]) == (n_pad, d_node_pad):
        x_pad = init_x.astype(jnp.float32)
    else:
        x_pad = jnp.zeros((n_pad, d_node_pad), jnp.float32)
        x_pad = x_pad.at[:n, : init_x.shape[1]].set(init_x.astype(jnp.float32))
    # padded nodes get segment id -1 so the pool ignores them
    batch_pad = jnp.full((1, n_pad), -1, jnp.int32).at[0, :n].set(batch.astype(jnp.int32))

    # Single fused kernel: lin_node + global_add_pool + FC head.
    out_pad = dtign_fused(
        batch_pad, x_pad, prep["w_node"], prep["b_node"],
        prep["ws"], prep["bs"], prep["scales"], prep["shifts"],
        prep["w_out"], prep["b_out"],
        g_pad=g_pad, tn=tn, num_fc=prep["num_fc"])

    return out_pad[:num_graphs, : prep["task_num"]].reshape(-1)


if __name__ == "__main__":
    key = jax.random.PRNGKey(0)
    k_param, k_x, k_b = jax.random.split(key, 3)

    # small shapes consistent with the module's forward
    node_dim, bond_dim, hidden_dim = 16, 8, 32
    fc_layer, task_num = 3, 1
    n_nodes, n_edges, num_graphs = 16, 24, 2

    params = init_params(k_param, node_dim, bond_dim, hidden_dim, fc_layer, task_num)
    prep = prepare_padded_params(params, node_dim, hidden_dim, task_num)

    init_x = jax.random.normal(k_x, (n_nodes, node_dim), jnp.float32)
    init_x_bond = jax.random.normal(k_b, (n_edges, bond_dim), jnp.float32)
    # first 10 nodes belong to graph 0, remaining 6 to graph 1
    batch = jnp.concatenate([jnp.zeros((10,), jnp.int32), jnp.ones((6,), jnp.int32)])

    # nodes with batch id >= num_graphs would be silently dropped by the pool
    assert int(jnp.max(batch)) < num_graphs

    out = dtign_forward(prep, init_x, init_x_bond, batch, num_graphs)
    out = jax.block_until_ready(out)
    assert out.shape == (num_graphs * task_num,)
    assert bool(jnp.all(jnp.isfinite(out)))
    print("KERNEL_OK")
</pallas_src>

<mosaic_0001>
module attributes {stable_mosaic.version = 11 : i64} {
  func.func @_dtign_fused_kernel(%arg0: i32, %arg1: memref<1x128xi32, #tpu.memory_space<vmem>>, %arg2: memref<128x16xf32, #tpu.memory_space<vmem>>, %arg3: memref<16x128xbf16, #tpu.memory_space<vmem>>, %arg4: memref<1x128xf32, #tpu.memory_space<vmem>>, %arg5: memref<3x128x128xbf16, #tpu.memory_space<vmem>>, %arg6: memref<3x128xf32, #tpu.memory_space<vmem>>, %arg7: memref<3x128xf32, #tpu.memory_space<vmem>>, %arg8: memref<3x128xf32, #tpu.memory_space<vmem>>, %arg9: memref<128x128xbf16, #tpu.memory_space<vmem>>, %arg10: memref<1x128xf32, #tpu.memory_space<vmem>>, %arg11: memref<8x128xf32, #tpu.memory_space<vmem>>, %arg12: memref<8x128xf32, #tpu.memory_space<vmem>>) attributes {dimension_semantics = [#tpu.dimension_semantics<arbitrary>], iteration_bounds = array<i64: 1>, scalar_prefetch = 0 : i64, scratch_operands = 1 : i64, tpu.core_type = #tpu.core_type<tc>, window_params = [{transform_indices = @transform_0, window_bounds = array<i64: 1, 128>}, {transform_indices = @transform_1, window_bounds = array<i64: 128, 16>}, {pipeline_mode = #tpu.pipeline_mode<synchronous>, transform_indices = @transform_2, window_bounds = array<i64: 16, 128>}, {pipeline_mode = #tpu.pipeline_mode<synchronous>, transform_indices = @transform_3, window_bounds = array<i64: 1, 128>}, {pipeline_mode = #tpu.pipeline_mode<synchronous>, transform_indices = @transform_4, window_bounds = array<i64: 3, 128, 128>}, {pipeline_mode = #tpu.pipeline_mode<synchronous>, transform_indices = @transform_5, window_bounds = array<i64: 3, 128>}, {pipeline_mode = #tpu.pipeline_mode<synchronous>, transform_indices = @transform_6, window_bounds = array<i64: 3, 128>}, {pipeline_mode = #tpu.pipeline_mode<synchronous>, transform_indices = @transform_7, window_bounds = array<i64: 3, 128>}, {pipeline_mode = #tpu.pipeline_mode<synchronous>, transform_indices = @transform_8, window_bounds = array<i64: 128, 128>}, {pipeline_mode = #tpu.pipeline_mode<synchronous>, transform_indices = @transform_9, window_bounds = array<i64: 1, 128>}, {pipeline_mode = #tpu.pipeline_mode<synchronous>, transform_indices = @transform_10, window_bounds = array<i64: 8, 128>}]} {
    %c0_i32 = arith.constant 0 : i32
    %0 = arith.cmpi eq, %arg0, %c0_i32 : i32
    %1 = arith.extui %0 : i1 to i32
    %c0_i32_0 = arith.constant 0 : i32
    %2 = arith.cmpi ne, %1, %c0_i32_0 : i32
    scf.if %2 {
      %cst_16 = arith.constant 0.000000e+00 : f32
      %31 = vector.broadcast %cst_16 : f32 to vector<8x128xf32>
      %c0_17 = arith.constant 0 : index
      %c0_18 = arith.constant 0 : index
      %32 = vector.load %arg12[%c0_17, %c0_18] : memref<8x128xf32, #tpu.memory_space<vmem>>, vector<8x128xf32>
      tpu.vector_store %arg12[%c0_17, %c0_18], %31 {strides = array<i32>} : memref<8x128xf32, #tpu.memory_space<vmem>>, vector<8x128xf32>,
    } else {
    }
    %c0 = arith.constant 0 : index
    %c0_1 = arith.constant 0 : index
    %3 = vector.load %arg2[%c0, %c0_1] : memref<128x16xf32, #tpu.memory_space<vmem>>, vector<128x16xf32>
    %4 = arith.truncf %3 : vector<128x16xf32> to vector<128x16xbf16>
    %c0_2 = arith.constant 0 : index
    %c0_3 = arith.constant 0 : index
    %5 = vector.load %arg3[%c0_2, %c0_3] : memref<16x128xbf16, #tpu.memory_space<vmem>>, vector<16x128xbf16>
    %cst = arith.constant dense<0.000000e+00> : vector<128x128xf32>
    %6 = tpu.matmul %4, %5, %cst {dimension_numbers = #tpu.dot_dimension_numbers<[1], [0], [0], [1], [0, 0, 1, 1], [], []>} : vector<128x16xbf16>, vector<16x128xbf16>, vector<128x128xf32> -> vector<128x128xf32>
    %c0_4 = arith.constant 0 : index
    %c0_5 = arith.constant 0 : index
    %7 = vector.load %arg4[%c0_4, %c0_5] : memref<1x128xf32, #tpu.memory_space<vmem>>, vector<1x128xf32>
    %8 = vector.broadcast %7 : vector<1x128xf32> to vector<128x128xf32>
    %9 = arith.addf %6, %8 : vector<128x128xf32>
    %10 = arith.negf %9 : vector<128x128xf32>
    %11 = math.exp %10 : vector<128x128xf32>
    %cst_6 = arith.constant 1.000000e+00 : f32
    %12 = vector.broadcast %cst_6 : f32 to vector<128x128xf32>
    %13 = arith.addf %12, %11 : vector<128x128xf32>
    %14 = arith.divf %12, %13 : vector<128x128xf32>
    %15 = arith.mulf %9, %14 : vector<128x128xf32>
    %c0_7 = arith.constant 0 : index
    %c0_8 = arith.constant 0 : index
    %16 = vector.load %arg1[%c0_7, %c0_8] : memref<1x128xi32, #tpu.memory_space<vmem>>, vector<1x128xi32>
    %17 = tpu.iota {dimensions = array<i32: 0>} : vector<8x128xi32>
    %18 = vector.broadcast %16 : vector<1x128xi32> to vector<8x128xi32>
    %19 = arith.cmpi eq, %17, %18 : vector<8x128xi32>
    %20 = arith.extui %19 : vector<8x128xi1> to vector<8x128xi32>
    %21 = arith.sitofp %20 : vector<8x128xi32> to vector<8x128xf32>
    %22 = arith.truncf %21 : vector<8x128xf32> to vector<8x128xbf16>
    %c0_9 = arith.constant 0 : index
    %c0_10 = arith.constant 0 : index
    %23 = vector.load %arg12[%c0_9, %c0_10] : memref<8x128xf32, #tpu.memory_space<vmem>>, vector<8x128xf32>
    %24 = arith.truncf %15 : vector<128x128xf32> to vector<128x128xbf16>
    %cst_11 = arith.constant dense<0.000000e+00> : vector<8x128xf32>
    %25 = tpu.matmul %22, %24, %cst_11 {dimension_numbers = #tpu.dot_dimension_numbers<[1], [0], [0], [1], [0, 0, 1, 1], [], []>} : vector<8x128xbf16>, vector<128x128xbf16>, vector<8x128xf32> -> vector<8x128xf32>
    %26 = arith.addf %23, %25 : vector<8x128xf32>
    %c0_12 = arith.constant 0 : index
    %c0_13 = arith.constant 0 : index
    %27 = vector.load %arg12[%c0_12, %c0_13] : memref<8x128xf32, #tpu.memory_space<vmem>>, vector<8x128xf32>
    tpu.vector_store %arg12[%c0_12, %c0_13], %26 {strides = array<i32>} : memref<8x128xf32, #tpu.memory_space<vmem>>, vector<8x128xf32>,
    %c0_i32_14 = arith.constant 0 : i32
    %28 = arith.cmpi eq, %arg0, %c0_i32_14 : i32
    %29 = arith.extui %28 : i1 to i32
    %c0_i32_15 = arith.constant 0 : i32
    %30 = arith.cmpi ne, %29, %c0_i32_15 : i32
    scf.if %30 {
      %c0_16 = arith.constant 0 : index
      %c0_17 = arith.constant 0 : index
      %31 = vector.load %arg12[%c0_16, %c0_17] : memref<8x128xf32, #tpu.memory_space<vmem>>, vector<8x128xf32>
      %32 = arith.truncf %31 : vector<8x128xf32> to vector<8x128xbf16>
      %c0_18 = arith.constant 0 : index
      %c0_19 = arith.constant 0 : index
      %c0_20 = arith.constant 0 : index
      %33 = vector.load %arg5[%c0_18, %c0_19, %c0_20] : memref<3x128x128xbf16, #tpu.memory_space<vmem>>, vector<1x128x128xbf16>
      %34 = vector.shape_cast %33 : vector<1x128x128xbf16> to vector<128x128xbf16>
      %cst_21 = arith.constant dense<0.000000e+00> : vector<8x128xf32>
      %35 = tpu.matmul %32, %34, %cst_21 {dimension_numbers = #tpu.dot_dimension_numbers<[1], [0], [0], [1], [0, 0, 1, 1], [], []>} : vector<8x128xbf16>, vector<128x128xbf16>, vector<8x128xf32> -> vector<8x128xf32>
      %c0_22 = arith.constant 0 : index
      %c0_23 = arith.constant 0 : index
      %36 = vector.load %arg6[%c0_22, %c0_23] : memref<3x128xf32, #tpu.memory_space<vmem>>, vector<1x128xf32>
      %37 = vector.broadcast %36 : vector<1x128xf32> to vector<8x128xf32>
      %38 = arith.addf %35, %37 : vector<8x128xf32>
      %cst_24 = arith.constant 0.000000e+00 : f32
      %39 = vector.broadcast %cst_24 : f32 to vector<8x128xf32>
      %40 = arith.cmpf oge, %38, %39 : vector<8x128xf32>
      %cst_25 = arith.constant 0.00999999977 : f32
      %41 = vector.broadcast %cst_25 : f32 to vector<8x128xf32>
      %42 = arith.mulf %41, %38 : vector<8x128xf32>
      %43 = arith.select %40, %38, %42 : vector<8x128xi1>, vector<8x128xf32>
      %c0_26 = arith.constant 0 : index
      %c0_27 = arith.constant 0 : index
      %44 = vector.load %arg7[%c0_26, %c0_27] : memref<3x128xf32, #tpu.memory_space<vmem>>, vector<1x128xf32>
      %45 = vector.broadcast %44 : vector<1x128xf32> to vector<8x128xf32>
      %46 = arith.mulf %43, %45 : vector<8x128xf32>
      %c0_28 = arith.constant 0 : index
      %c0_29 = arith.constant 0 : index
      %47 = vector.load %arg8[%c0_28, %c0_29] : memref<3x128xf32, #tpu.memory_space<vmem>>, vector<1x128xf32>
      %48 = vector.broadcast %47 : vector<1x128xf32> to vector<8x128xf32>
      %49 = arith.addf %46, %48 : vector<8x128xf32>
      %50 = arith.truncf %49 : vector<8x128xf32> to vector<8x128xbf16>
      %c1 = arith.constant 1 : index
      %c0_30 = arith.constant 0 : index
      %c0_31 = arith.constant 0 : index
      %51 = vector.load %arg5[%c1, %c0_30, %c0_31] : memref<3x128x128xbf16, #tpu.memory_space<vmem>>, vector<1x128x128xbf16>
      %52 = vector.shape_cast %51 : vector<1x128x128xbf16> to vector<128x128xbf16>
      %cst_32 = arith.constant dense<0.000000e+00> : vector<8x128xf32>
      %53 = tpu.matmul %50, %52, %cst_32 {dimension_numbers = #tpu.dot_dimension_numbers<[1], [0], [0], [1], [0, 0, 1, 1], [], []>} : vector<8x128xbf16>, vector<128x128xbf16>, vector<8x128xf32> -> vector<8x128xf32>
      %c1_33 = arith.constant 1 : index
      %c0_34 = arith.constant 0 : index
      %54 = vector.load %arg6[%c1_33, %c0_34] : memref<3x128xf32, #tpu.memory_space<vmem>>, vector<1x128xf32>
      %55 = vector.broadcast %54 : vector<1x128xf32> to vector<8x128xf32>
      %56 = arith.addf %53, %55 : vector<8x128xf32>
      %cst_35 = arith.constant 0.000000e+00 : f32
      %57 = vector.broadcast %cst_35 : f32 to vector<8x128xf32>
      %58 = arith.cmpf oge, %56, %57 : vector<8x128xf32>
      %cst_36 = arith.constant 0.00999999977 : f32
      %59 = vector.broadcast %cst_36 : f32 to vector<8x128xf32>
      %60 = arith.mulf %59, %56 : vector<8x128xf32>
      %61 = arith.select %58, %56, %60 : vector<8x128xi1>, vector<8x128xf32>
      %c1_37 = arith.constant 1 : index
      %c0_38 = arith.constant 0 : index
      %62 = vector.load %arg7[%c1_37, %c0_38] : memref<3x128xf32, #tpu.memory_space<vmem>>, vector<1x128xf32>
      %63 = vector.broadcast %62 : vector<1x128xf32> to vector<8x128xf32>
      %64 = arith.mulf %61, %63 : vector<8x128xf32>
      %c1_39 = arith.constant 1 : index
      %c0_40 = arith.constant 0 : index
      %65 = vector.load %arg8[%c1_39, %c0_40] : memref<3x128xf32, #tpu.memory_space<vmem>>, vector<1x128xf32>
      %66 = vector.broadcast %65 : vector<1x128xf32> to vector<8x128xf32>
      %67 = arith.addf %64, %66 : vector<8x128xf32>
      %68 = arith.truncf %67 : vector<8x128xf32> to vector<8x128xbf16>
      %c2 = arith.constant 2 : index
      %c0_41 = arith.constant 0 : index
      %c0_42 = arith.constant 0 : index
      %69 = vector.load %arg5[%c2, %c0_41, %c0_42] : memref<3x128x128xbf16, #tpu.memory_space<vmem>>, vector<1x128x128xbf16>
      %70 = vector.shape_cast %69 : vector<1x128x128xbf16> to vector<128x128xbf16>
      %cst_43 = arith.constant dense<0.000000e+00> : vector<8x128xf32>
      %71 = tpu.matmul %68, %70, %cst_43 {dimension_numbers = #tpu.dot_dimension_numbers<[1], [0], [0], [1], [0, 0, 1, 1], [], []>} : vector<8x128xbf16>, vector<128x128xbf16>, vector<8x128xf32> -> vector<8x128xf32>
      %c2_44 = arith.constant 2 : index
      %c0_45 = arith.constant 0 : index
      %72 = vector.load %arg6[%c2_44, %c0_45] : memref<3x128xf32, #tpu.memory_space<vmem>>, vector<1x128xf32>
      %73 = vector.broadcast %72 : vector<1x128xf32> to vector<8x128xf32>
      %74 = arith.addf %71, %73 : vector<8x128xf32>
      %cst_46 = arith.constant 0.000000e+00 : f32
      %75 = vector.broadcast %cst_46 : f32 to vector<8x128xf32>
      %76 = arith.cmpf oge, %74, %75 : vector<8x128xf32>
      %cst_47 = arith.constant 0.00999999977 : f32
      %77 = vector.broadcast %cst_47 : f32 to vector<8x128xf32>
      %78 = arith.mulf %77, %74 : vector<8x128xf32>
      %79 = arith.select %76, %74, %78 : vector<8x128xi1>, vector<8x128xf32>
      %c2_48 = arith.constant 2 : index
      %c0_49 = arith.constant 0 : index
      %80 = vector.load %arg7[%c2_48, %c0_49] : memref<3x128xf32, #tpu.memory_space<vmem>>, vector<1x128xf32>
      %81 = vector.broadcast %80 : vector<1x128xf32> to vector<8x128xf32>
      %82 = arith.mulf %79, %81 : vector<8x128xf32>
      %c2_50 = arith.constant 2 : index
      %c0_51 = arith.constant 0 : index
      %83 = vector.load %arg8[%c2_50, %c0_51] : memref<3x128xf32, #tpu.memory_space<vmem>>, vector<1x128xf32>
      %84 = vector.broadcast %83 : vector<1x128xf32> to vector<8x128xf32>
      %85 = arith.addf %82, %84 : vector<8x128xf32>
      %86 = arith.truncf %85 : vector<8x128xf32> to vector<8x128xbf16>
      %c0_52 = arith.constant 0 : index
      %c0_53 = arith.constant 0 : index
      %87 = vector.load %arg9[%c0_52, %c0_53] : memref<128x128xbf16, #tpu.memory_space<vmem>>, vector<128x128xbf16>
      %cst_54 = arith.constant dense<0.000000e+00> : vector<8x128xf32>
      %88 = tpu.matmul %86, %87, %cst_54 {dimension_numbers = #tpu.dot_dimension_numbers<[1], [0], [0], [1], [0, 0, 1, 1], [], []>} : vector<8x128xbf16>, vector<128x128xbf16>, vector<8x128xf32> -> vector<8x128xf32>
      %c0_55 = arith.constant 0 : index
      %c0_56 = arith.constant 0 : index
      %89 = vector.load %arg10[%c0_55, %c0_56] : memref<1x128xf32, #tpu.memory_space<vmem>>, vector<1x128xf32>
      %90 = vector.broadcast %89 : vector<1x128xf32> to vector<8x128xf32>
      %91 = arith.addf %88, %90 : vector<8x128xf32>
      %c0_57 = arith.constant 0 : index
      %c0_58 = arith.constant 0 : index
      %92 = vector.load %arg11[%c0_57, %c0_58] : memref<8x128xf32, #tpu.memory_space<vmem>>, vector<8x128xf32>
      tpu.vector_store %arg11[%c0_57, %c0_58], %91 {strides = array<i32>} : memref<8x128xf32, #tpu.memory_space<vmem>>, vector<8x128xf32>,
    } else {
    }
    return
  }
  func.func @transform_0(%arg0: i32) -> (i32, i32) {
    %c0_i32 = arith.constant 0 : i32
    %c0_i32_0 = arith.constant 0 : i32
    return %c0_i32, %arg0 : i32, i32
  }
  func.func @transform_1(%arg0: i32) -> (i32, i32) {
    %c0_i32 = arith.constant 0 : i32
    %c0_i32_0 = arith.constant 0 : i32
    return %arg0, %c0_i32 : i32, i32
  }
  func.func @transform_2(%arg0: i32) -> (i32, i32) {
    %c0_i32 = arith.constant 0 : i32
    %c0_i32_0 = arith.constant 0 : i32
    %c0_i32_1 = arith.constant 0 : i32
    return %c0_i32, %c0_i32_0 : i32, i32
  }
  func.func @transform_3(%arg0: i32) -> (i32, i32) {
    %c0_i32 = arith.constant 0 : i32
    %c0_i32_0 = arith.constant 0 : i32
    %c0_i32_1 = arith.constant 0 : i32
    return %c0_i32, %c0_i32_0 : i32, i32
  }
  func.func @transform_4(%arg0: i32) -> (i32, i32, i32) {
    %c0_i32 = arith.constant 0 : i32
    %c0_i32_0 = arith.constant 0 : i32
    %c0_i32_1 = arith.constant 0 : i32
    %c0_i32_2 = arith.constant 0 : i32
    return %c0_i32, %c0_i32_0, %c0_i32_1 : i32, i32, i32
  }
  func.func @transform_5(%arg0: i32) -> (i32, i32) {
    %c0_i32 = arith.constant 0 : i32
    %c0_i32_0 = arith.constant 0 : i32
    %c0_i32_1 = arith.constant 0 : i32
    return %c0_i32, %c0_i32_0 : i32, i32
  }
  func.func @transform_6(%arg0: i32) -> (i32, i32) {
    %c0_i32 = arith.constant 0 : i32
    %c0_i32_0 = arith.constant 0 : i32
    %c0_i32_1 = arith.constant 0 : i32
    return %c0_i32, %c0_i32_0 : i32, i32
  }
  func.func @transform_7(%arg0: i32) -> (i32, i32) {
    %c0_i32 = arith.constant 0 : i32
    %c0_i32_0 = arith.constant 0 : i32
    %c0_i32_1 = arith.constant 0 : i32
    return %c0_i32, %c0_i32_0 : i32, i32
  }
  func.func @transform_8(%arg0: i32) -> (i32, i32) {
    %c0_i32 = arith.constant 0 : i32
    %c0_i32_0 = arith.constant 0 : i32
    %c0_i32_1 = arith.constant 0 : i32
    return %c0_i32, %c0_i32_0 : i32, i32
  }
  func.func @transform_9(%arg0: i32) -> (i32, i32) {
    %c0_i32 = arith.constant 0 : i32
    %c0_i32_0 = arith.constant 0 : i32
    %c0_i32_1 = arith.constant 0 : i32
    return %c0_i32, %c0_i32_0 : i32, i32
  }
  func.func @transform_10(%arg0: i32) -> (i32, i32) {
    %c0_i32 = arith.constant 0 : i32
    %c0_i32_0 = arith.constant 0 : i32
    %c0_i32_1 = arith.constant 0 : i32
    return %c0_i32, %c0_i32_0 : i32, i32
  }
}

</mosaic_0001>

<llo_original>
// kernel: tpu_custom_call.1
$region0: #{tpu_custom_call.1}
  #allocation0 [shape = 'u32[]', space=smem, size = 0x4, offset = 0x4, fixed_abs, tag = 'smem constant byte address 0x4 - core index']
  #allocation1 [shape = 'u32[144,128]{1,0:T(1,128)}', space=vmem, size = 0x12000, scoped, tag = 'internal scratch']
  #allocation2 [shape = 'f32[8,128]{1,0:T(8,128)}', space=vmem, size = 0x1000, scoped, tag = 'scratch operand']
  %s0 = inlined_call_operand.vmem [shape: s32[1,128], index: 0, kind: input, shape index: {}]
  %s1 = inlined_call_operand.vmem [shape: f32[128,16], index: 1, kind: input, shape index: {}]
  %s2 = inlined_call_operand.vmem [shape: bf16[16,128], index: 2, kind: input, shape index: {}]
  %s3 = inlined_call_operand.vmem [shape: f32[1,128], index: 3, kind: input, shape index: {}]
  %s4 = inlined_call_operand.hbm [shape: bf16[3,128,128], index: 4, kind: input, shape index: {}]
  %s5 = inlined_call_operand.vmem [shape: f32[3,128], index: 5, kind: input, shape index: {}]
  %s6 = inlined_call_operand.vmem [shape: f32[3,128], index: 6, kind: input, shape index: {}]
  %s7 = inlined_call_operand.vmem [shape: f32[3,128], index: 7, kind: input, shape index: {}]
  %s8 = inlined_call_operand.vmem [shape: bf16[128,128], index: 8, kind: input, shape index: {}]
  %s9 = inlined_call_operand.vmem [shape: f32[1,128], index: 9, kind: input, shape index: {}]
  %s10 = inlined_call_operand.hbm [shape: f32[8,128], index: 10, kind: output, shape index: {}]
  %s11 = sld [smem:[#allocation0]]
  $region62: #{tpu_custom_call.1} parent=0
    _
  %s13 = ssub.s32 1, %s11
  %s14 = scalar_select 0, %s13, %s11
  $region1: #{tpu_custom_call.1} parent=0
    #allocation3 [shape = 'u8[98304]{0}', space=vmem, size = 0x18000, scoped, tag = 'input window, operand 4, single buffered']
    #allocation4 [shape = 's32[1]{0}', space=sflag, size = 0x4, scoped, tag = 'scoped memory for tpu_custom_call.1']
    #allocation5 [shape = 's32[1]{0}', space=sflag, size = 0x4, scoped, tag = 'scoped memory for tpu_custom_call.1']
    #allocation6 [shape = 'u8[4096]{0}', space=vmem, size = 0x1000, scoped, tag = 'output window, operand 0, single buffered']
    %15 = vsyncpa [#allocation4], 0
    %16 = vsyncpa [#allocation5], 0
    // Predicated region
    $region2: #{tpu_custom_call.1} parent=1 // pred_check
      _
    $region3: #{tpu_custom_call.1} parent=1 // pred_check_branch
      %18 = sbr.rel (0) target = $region5
    $region4: #{tpu_custom_call.1} parent=1 // pred_region
      _
    $region5: #{tpu_custom_call.1} parent=1 // pred_fallthru
      _
    // Predicated region
    $region6: #{tpu_custom_call.1} parent=1 // pred_check
      _
    $region7: #{tpu_custom_call.1} parent=1 // pred_check_branch
      %20 = sbr.rel (0) target = $region9
    $region8: #{tpu_custom_call.1} parent=1 // pred_region
      _
    $region9: #{tpu_custom_call.1} parent=1 // pred_fallthru
      _
    // Predicated region
    $region10: #{tpu_custom_call.1} parent=1 // pred_check
      _
    $region11: #{tpu_custom_call.1} parent=1 // pred_check_branch
      %22 = sbr.rel (0) target = $region13
    $region12: #{tpu_custom_call.1} parent=1 // pred_region
      _
    $region13: #{tpu_custom_call.1} parent=1 // pred_fallthru
      _
    // Predicated region
    $region14: #{tpu_custom_call.1} parent=1 // pred_check
      _
    $region15: #{tpu_custom_call.1} parent=1 // pred_check_branch
      %24 = sbr.rel (0) target = $region17
    $region16: #{tpu_custom_call.1} parent=1 // pred_region
      _
    $region17: #{tpu_custom_call.1} parent=1 // pred_fallthru
      _
    // Predicated region
    $region18: #{tpu_custom_call.1} parent=1 // pred_check
      _
    $region19: #{tpu_custom_call.1} parent=1 // pred_check_branch
      %26 = sbr.rel (0) target = $region21
    $region20: #{tpu_custom_call.1} parent=1 // pred_region
      %s28 = ssub.s32 3072, 3072
      %29 = vsyncadd [#allocation4], %s28
      %s30 = sshll.u32 [#allocation3], 4
      %s31 = int_to_ptr.vmem [resolvable:$true] %s30
      %36 = dma.hbm_to_vmem [thread:$0]  %s4, 3072, %s31, [#allocation4], 64, 64, 4
    $region21: #{tpu_custom_call.1} parent=1 // pred_fallthru
      _
    // Predicated region
    $region22: #{tpu_custom_call.1} parent=1 // pred_check
      _
    $region23: #{tpu_custom_call.1} parent=1 // pred_check_branch
      %38 = sbr.rel (0) target = $region25
    $region24: #{tpu_custom_call.1} parent=1 // pred_region
      _
    $region25: #{tpu_custom_call.1} parent=1 // pred_fallthru
      _
    // Predicated region
    $region26: #{tpu_custom_call.1} parent=1 // pred_check
      _
    $region27: #{tpu_custom_call.1} parent=1 // pred_check_branch
      %40 = sbr.rel (0) target = $region29
    $region28: #{tpu_custom_call.1} parent=1 // pred_region
      _
    $region29: #{tpu_custom_call.1} parent=1 // pred_fallthru
      _
    // Predicated region
    $region30: #{tpu_custom_call.1} parent=1 // pred_check
      _
    $region31: #{tpu_custom_call.1} parent=1 // pred_check_branch
      %42 = sbr.rel (0) target = $region33
    $region32: #{tpu_custom_call.1} parent=1 // pred_region
      _
    $region33: #{tpu_custom_call.1} parent=1 // pred_fallthru
      _
    // Predicated region
    $region34: #{tpu_custom_call.1} parent=1 // pred_check
      _
    $region35: #{tpu_custom_call.1} parent=1 // pred_check_branch
      %44 = sbr.rel (0) target = $region37
    $region36: #{tpu_custom_call.1} parent=1 // pred_region
      _
    $region37: #{tpu_custom_call.1} parent=1 // pred_fallthru
      _
    // Predicated region
    $region38: #{tpu_custom_call.1} parent=1 // pred_check
      _
    $region39: #{tpu_custom_call.1} parent=1 // pred_check_branch
      %46 = sbr.rel (0) target = $region41
    $region40: #{tpu_custom_call.1} parent=1 // pred_region
      _
    $region41: #{tpu_custom_call.1} parent=1 // pred_fallthru
      _
    // Predicated region
    $region42: #{tpu_custom_call.1} parent=1 // pred_check
      _
    $region43: #{tpu_custom_call.1} parent=1 // pred_check_branch
      %48 = sbr.rel (0) target = $region45
    $region44: #{tpu_custom_call.1} parent=1 // pred_region
      %49 = dma.done [#allocation4], 3072
    $region45: #{tpu_custom_call.1} parent=1 // pred_fallthru
      _
    %p51 = scmp.eq.s32.totalorder 0, 0
    // Predicated region
    $region46: #{tpu_custom_call.1} parent=1 // pred_check
      %p52 = pneg %p51
    $region47: #{tpu_custom_call.1} parent=1 // pred_check_branch
      %54 = sbr.rel (%p52) target = $region49
    $region48: #{tpu_custom_call.1} parent=1 // pred_region
      %55 = vst [vmem:[#allocation2] sm:$0xff] 0.0
    $region49: #{tpu_custom_call.1} parent=1 // pred_fallthru
      _
    %v56 = vld [vmem:[%s1] sm:$0xff]
    %v57 = vld [vmem:[%s1 + $0x8] sm:$0xff]
    %v58 = vld [vmem:[%s1 + $0x10] sm:$0xff]
    %v59 = vld [vmem:[%s1 + $0x18] sm:$0xff]
    %v60 = vld [vmem:[%s1 + $0x20] sm:$0xff]
    %v61 = vld [vmem:[%s1 + $0x28] sm:$0xff]
    %v62 = vld [vmem:[%s1 + $0x30] sm:$0xff]
    %v63 = vld [vmem:[%s1 + $0x38] sm:$0xff]
    %v64 = vld [vmem:[%s1 + $0x40] sm:$0xff]
    %v65 = vld [vmem:[%s1 + $0x48] sm:$0xff]
    %v66 = vld [vmem:[%s1 + $0x50] sm:$0xff]
    %v67 = vld [vmem:[%s1 + $0x58] sm:$0xff]
    %v68 = vld [vmem:[%s1 + $0x60] sm:$0xff]
    %v69 = vld [vmem:[%s1 + $0x68] sm:$0xff]
    %v70 = vld [vmem:[%s1 + $0x70] sm:$0xff]
    %v71 = vld [vmem:[%s1 + $0x78] sm:$0xff]
    %v72 = vpack.c.bf16 %v57, %v56
    %v73 = vpack.c.bf16 %v59, %v58
    %v74 = vpack.c.bf16 %v61, %v60
    %v75 = vpack.c.bf16 %v63, %v62
    %v76 = vpack.c.bf16 %v65, %v64
    %v77 = vpack.c.bf16 %v67, %v66
    %v78 = vpack.c.bf16 %v69, %v68
    %v79 = vpack.c.bf16 %v71, %v70
    %v80 = vld [vmem:[%s2] sm:$0xf]
    %v81 = vld [vmem:[%s2 + $0x4] sm:$0xf]
    %v82 = vld [vmem:[%s3] sm:$0x1]
    %v84 = vlaneseq
    %v85 = vshrl.u32 %v84, 7
    %v86 = vsub.s32 0, %v85
    %v87 = vrot.slane %v82, %v86
    %v91 = vunpack.c.l.b16 %v80
    %v92 = vunpack.c.l.b16 %v81
    %v93 = vpack.c.b16 %v92, %v91
    %vm95 = vcmask 130048
    %v97 = vsel %vm95, %v72, 0
    %v100 = vsel %vm95, %v73, 0
    %v103 = vsel %vm95, %v74, 0
    %v106 = vsel %vm95, %v75, 0
    %v109 = vsel %vm95, %v76, 0
    %v112 = vsel %vm95, %v77, 0
    %v115 = vsel %vm95, %v78, 0
    %v118 = vsel %vm95, %v79, 0
    %120 = vmatprep.subr.bf16.mxu0 0
    %121 = vmatpush1.bf16.msra.mxu0 %v93
    %122 = vmatprep.subr.bf16.mxu0 0
    %123 = vmatpush1.bf16.msra.mxu0 0
    %124 = vmatprep.subr.bf16.mxu0 0
    %125 = vmatpush1.bf16.msra.mxu0 0
    %126 = vmatprep.subr.bf16.mxu0 0
    %127 = vmatpush1.bf16.msra.mxu0 0
    %128 = vmatprep.subr.bf16.mxu0 0
    %129 = vmatpush1.bf16.msra.mxu0 0
    %130 = vmatprep.subr.bf16.mxu0 0
    %131 = vmatpush1.bf16.msra.mxu0 0
    %132 = vmatprep.subr.bf16.mxu0 0
    %133 = vmatpush1.bf16.msra.mxu0 0
    %134 = vmatprep.subr.bf16.mxu0 0
    %135 = vmatpush1.bf16.msra.mxu0 0
    %136 = vmatprep.subr.bf16.mxu0 0
    %137 = vmatpush1.bf16.msra.mxu0 0
    %138 = vmatprep.subr.bf16.mxu0 0
    %139 = vmatpush1.bf16.msra.mxu0 0
    %140 = vmatprep.subr.bf16.mxu0 0
    %141 = vmatpush1.bf16.msra.mxu0 0
    %142 = vmatprep.subr.bf16.mxu0 0
    %143 = vmatpush1.bf16.msra.mxu0 0
    %144 = vmatprep.subr.bf16.mxu0 0
    %145 = vmatpush1.bf16.msra.mxu0 0
    %146 = vmatprep.subr.bf16.mxu0 0
    %147 = vmatpush1.bf16.msra.mxu0 0
    %148 = vmatprep.subr.bf16.mxu0 0
    %149 = vmatpush1.bf16.msra.mxu0 0
    %150 = vmatprep.subr.bf16.mxu0 0
    %151 = vmatpush1.bf16.msra.mxu0 0
    %152 = vmatprep.mubr.bf16.mxu0 0
    %153 = vmatmul.mubr.bf16.gmra.mrb[0].mxu0 %v97
    %v154 = vpop.f32.mrb[0].mxu0
    %v155 = vadd.f32 %v87, %v154
    %v156 = vpop.f32.mrb[0].mxu0
    %v157 = vpop.f32.mrb[0].mxu0
    %v158 = vadd.f32 %v87, %v157
    %v159 = vpop.f32.mrb[0].mxu0
    %160 = vmatprep.mubr.bf16.mxu0 0
    %161 = vmatmul.mubr.bf16.gmra.mrb[0].mxu0 %v100
    %v162 = vpop.f32.mrb[0].mxu0
    %v163 = vadd.f32 %v87, %v162
    %v164 = vpop.f32.mrb[0].mxu0
    %v165 = vpop.f32.mrb[0].mxu0
    %v166 = vadd.f32 %v87, %v165
    %v167 = vpop.f32.mrb[0].mxu0
    %168 = vmatprep.mubr.bf16.mxu0 0
    %169 = vmatmul.mubr.bf16.gmra.mrb[0].mxu0 %v103
    %v170 = vpop.f32.mrb[0].mxu0
    %v171 = vadd.f32 %v87, %v170
    %v172 = vpop.f32.mrb[0].mxu0
    %v173 = vpop.f32.mrb[0].mxu0
    %v174 = vadd.f32 %v87, %v173
    %v175 = vpop.f32.mrb[0].mxu0
    %176 = vmatprep.mubr.bf16.mxu0 0
    %177 = vmatmul.mubr.bf16.gmra.mrb[0].mxu0 %v106
    %v178 = vpop.f32.mrb[0].mxu0
    %v179 = vadd.f32 %v87, %v178
    %v180 = vpop.f32.mrb[0].mxu0
    %v181 = vpop.f32.mrb[0].mxu0
    %v182 = vadd.f32 %v87, %v181
    %v183 = vpop.f32.mrb[0].mxu0
    %184 = vmatprep.mubr.bf16.mxu0 0
    %185 = vmatmul.mubr.bf16.gmra.mrb[0].mxu0 %v109
    %v186 = vpop.f32.mrb[0].mxu0
    %v187 = vadd.f32 %v87, %v186
    %v188 = vpop.f32.mrb[0].mxu0
    %v189 = vpop.f32.mrb[0].mxu0
    %v190 = vadd.f32 %v87, %v189
    %v191 = vpop.f32.mrb[0].mxu0
    %192 = vmatprep.mubr.bf16.mxu0 0
    %193 = vmatmul.mubr.bf16.gmra.mrb[0].mxu0 %v112
    %v194 = vpop.f32.mrb[0].mxu0
    %v195 = vadd.f32 %v87, %v194
    %v196 = vpop.f32.mrb[0].mxu0
    %v197 = vpop.f32.mrb[0].mxu0
    %v198 = vadd.f32 %v87, %v197
    %v199 = vpop.f32.mrb[0].mxu0
    %200 = vmatprep.mubr.bf16.mxu0 0
    %201 = vmatmul.mubr.bf16.gmra.mrb[0].mxu0 %v115
    %v202 = vpop.f32.mrb[0].mxu0
    %v203 = vadd.f32 %v87, %v202
    %v204 = vpop.f32.mrb[0].mxu0
    %v205 = vpop.f32.mrb[0].mxu0
    %v206 = vadd.f32 %v87, %v205
    %v207 = vpop.f32.mrb[0].mxu0
    %208 = vmatprep.mubr.bf16.mxu0 0
    %209 = vmatmul.mubr.bf16.gmra.mrb[0].mxu0 %v118
    %v210 = vpop.f32.mrb[0].mxu0
    %v211 = vadd.f32 %v87, %v210
    %v212 = vpop.f32.mrb[0].mxu0
    %v213 = vpop.f32.mrb[0].mxu0
    %v214 = vadd.f32 %v87, %v213
    %v215 = vpop.f32.mrb[0].mxu0
    %216 = vdwg.mxu0
    %v217 = vxor.u32 %v155, 2147483648
    %v218 = vxor.u32 %v158, 2147483648
    %v219 = vxor.u32 %v163, 2147483648
    %v220 = vxor.u32 %v166, 2147483648
    %v221 = vxor.u32 %v171, 2147483648
    %v222 = vxor.u32 %v174, 2147483648
    %v223 = vxor.u32 %v179, 2147483648
    %v224 = vxor.u32 %v182, 2147483648
    %v225 = vxor.u32 %v187, 2147483648
    %v226 = vxor.u32 %v190, 2147483648
    %v227 = vxor.u32 %v195, 2147483648
    %v228 = vxor.u32 %v198, 2147483648
    %v229 = vxor.u32 %v203, 2147483648
    %v230 = vxor.u32 %v206, 2147483648
    %v231 = vxor.u32 %v211, 2147483648
    %v232 = vxor.u32 %v214, 2147483648
    %v233 = vmul.f32 %v217, 1.442695
    %v234 = vpow.pop %v233
    %v235 = vmul.f32 %v218, 1.442695
    %v236 = vpow.pop %v235
    %v237 = vmul.f32 %v219, 1.442695
    %v238 = vpow.pop %v237
    %v239 = vmul.f32 %v220, 1.442695
    %v240 = vpow.pop %v239
    %v241 = vmul.f32 %v221, 1.442695
    %v242 = vpow.pop %v241
    %v243 = vmul.f32 %v222, 1.442695
    %v244 = vpow.pop %v243
    %v245 = vmul.f32 %v223, 1.442695
    %v246 = vpow.pop %v245
    %v247 = vmul.f32 %v224, 1.442695
    %v248 = vpow.pop %v247
    %v249 = vmul.f32 %v225, 1.442695
    %v250 = vpow.pop %v249
    %v251 = vmul.f32 %v226, 1.442695
    %v252 = vpow.pop %v251
    %v253 = vmul.f32 %v227, 1.442695
    %v254 = vpow.pop %v253
    %v255 = vmul.f32 %v228, 1.442695
    %v256 = vpow.pop %v255
    %v257 = vmul.f32 %v229, 1.442695
    %v258 = vpow.pop %v257
    %v259 = vmul.f32 %v230, 1.442695
    %v260 = vpow.pop %v259
    %v261 = vmul.f32 %v231, 1.442695
    %v262 = vpow.pop %v261
    %v263 = vmul.f32 %v232, 1.442695
    %v264 = vpow.pop %v263
    %v265 = vadd.f32 %v234, 1.0
    %v266 = vadd.f32 %v236, 1.0
    %v267 = vadd.f32 %v238, 1.0
    %v268 = vadd.f32 %v240, 1.0
    %v269 = vadd.f32 %v242, 1.0
    %v270 = vadd.f32 %v244, 1.0
    %v271 = vadd.f32 %v246, 1.0
    %v272 = vadd.f32 %v248, 1.0
    %v273 = vadd.f32 %v250, 1.0
    %v274 = vadd.f32 %v252, 1.0
    %v275 = vadd.f32 %v254, 1.0
    %v276 = vadd.f32 %v256, 1.0
    %v277 = vadd.f32 %v258, 1.0
    %v278 = vadd.f32 %v260, 1.0
    %v279 = vadd.f32 %v262, 1.0
    %v280 = vadd.f32 %v264, 1.0
    %v281 = vrcp.pop %v265
    %v282 = vmul.f32 1.0, %v281
    %v283 = vrcp.pop %v266
    %v284 = vmul.f32 1.0, %v283
    %v285 = vrcp.pop %v267
    %v286 = vmul.f32 1.0, %v285
    %v287 = vrcp.pop %v268
    %v288 = vmul.f32 1.0, %v287
    %v289 = vrcp.pop %v269
    %v290 = vmul.f32 1.0, %v289
    %v291 = vrcp.pop %v270
    %v292 = vmul.f32 1.0, %v291
    %v293 = vrcp.pop %v271
    %v294 = vmul.f32 1.0, %v293
    %v295 = vrcp.pop %v272
    %v296 = vmul.f32 1.0, %v295
    %v297 = vrcp.pop %v273
    %v298 = vmul.f32 1.0, %v297
    %v299 = vrcp.pop %v274
    %v300 = vmul.f32 1.0, %v299
    %v301 = vrcp.pop %v275
    %v302 = vmul.f32 1.0, %v301
    %v303 = vrcp.pop %v276
    %v304 = vmul.f32 1.0, %v303
    %v305 = vrcp.pop %v277
    %v306 = vmul.f32 1.0, %v305
    %v307 = vrcp.pop %v278
    %v308 = vmul.f32 1.0, %v307
    %v309 = vrcp.pop %v279
    %v310 = vmul.f32 1.0, %v309
    %v311 = vrcp.pop %v280
    %v312 = vmul.f32 1.0, %v311
    %v313 = vmul.f32 %v155, %v282
    %v314 = vmul.f32 %v158, %v284
    %v315 = vmul.f32 %v163, %v286
    %v316 = vmul.f32 %v166, %v288
    %v317 = vmul.f32 %v171, %v290
    %v318 = vmul.f32 %v174, %v292
    %v319 = vmul.f32 %v179, %v294
    %v320 = vmul.f32 %v182, %v296
    %v321 = vmul.f32 %v187, %v298
    %v322 = vmul.f32 %v190, %v300
    %v323 = vmul.f32 %v195, %v302
    %v324 = vmul.f32 %v198, %v304
    %v325 = vmul.f32 %v203, %v306
    %v326 = vmul.f32 %v206, %v308
    %v327 = vmul.f32 %v211, %v310
    %v328 = vmul.f32 %v214, %v312
    %v329 = vld [vmem:[%s0] sm:$0x1]
    %v330 = vlaneseq
    %v331 = vshrl.u32 %v330, 7
    %v332 = vlaneseq
    %v333 = vshrl.u32 %v332, 7
    %v334 = vsub.s32 0, %v333
    %v335 = vrot.slane %v329, %v334
    %vm336 = vcmp.eq.s32.totalorder %v331, %v335
    %v337 = vsel %vm336, 1, 0
    %v338 = vcvt.s32.f32 %v337
    %v339 = vpack.c.bf16 %v338, %v338
    %v340 = vld [vmem:[#allocation2] sm:$0xff]
    %v341 = vpack.c.bf16 %v314, %v313
    %v342 = vpack.c.bf16 %v316, %v315
    %v343 = vpack.c.bf16 %v318, %v317
    %v344 = vpack.c.bf16 %v320, %v319
    %v345 = vpack.c.bf16 %v322, %v321
    %v346 = vpack.c.bf16 %v324, %v323
    %v347 = vpack.c.bf16 %v326, %v325
    %v348 = vpack.c.bf16 %v328, %v327
    %349 = vmatprep.subr.bf16.mxu0 0
    %350 = vmatpush1.bf16.msra.mxu0 %v341
    %351 = vmatprep.subr.bf16.mxu0 0
    %352 = vmatpush1.bf16.msra.mxu0 %v342
    %353 = vmatprep.subr.bf16.mxu0 0
    %354 = vmatpush1.bf16.msra.mxu0 %v343
    %355 = vmatprep.subr.bf16.mxu0 0
    %356 = vmatpush1.bf16.msra.mxu0 %v344
    %357 = vmatprep.subr.bf16.mxu0 0
    %358 = vmatpush1.bf16.msra.mxu0 %v345
    %359 = vmatprep.subr.bf16.mxu0 0
    %360 = vmatpush1.bf16.msra.mxu0 %v346
    %361 = vmatprep.subr.bf16.mxu0 0
    %362 = vmatpush1.bf16.msra.mxu0 %v347
    %363 = vmatprep.subr.bf16.mxu0 0
    %364 = vmatpush1.bf16.msra.mxu0 %v348
    %365 = vmatprep.subr.bf16.mxu0 0
    %366 = vmatpush1.bf16.msra.mxu0 0
    %367 = vmatprep.subr.bf16.mxu0 0
    %368 = vmatpush1.bf16.msra.mxu0 0
    %369 = vmatprep.subr.bf16.mxu0 0
    %370 = vmatpush1.bf16.msra.mxu0 0
    %371 = vmatprep.subr.bf16.mxu0 0
    %372 = vmatpush1.bf16.msra.mxu0 0
    %373 = vmatprep.subr.bf16.mxu0 0
    %374 = vmatpush1.bf16.msra.mxu0 0
    %375 = vmatprep.subr.bf16.mxu0 0
    %376 = vmatpush1.bf16.msra.mxu0 0
    %377 = vmatprep.subr.bf16.mxu0 0
    %378 = vmatpush1.bf16.msra.mxu0 0
    %379 = vmatprep.subr.bf16.mxu0 0
    %380 = vmatpush1.bf16.msra.mxu0 0
    %381 = vmatprep.mubr.bf16.mxu0 0
    %382 = vmatmul.mubr.bf16.gmra.mrb[0].mxu0 %v339
    %v383 = vpop.f32.mrb[0].mxu0
    %v384 = vadd.f32 0.0, %v383
    %v385 = vpop.f32.mrb[0].mxu0
    %v386 = vpop.f32.mrb[0].mxu0
    %v387 = vpop.f32.mrb[0].mxu0
    %388 = vdwg.mxu0
    %v389 = vadd.f32 %v340, %v384
    %390 = vst [vmem:[#allocation2] sm:$0xff] %v389
    // Predicated region
    $region50: #{tpu_custom_call.1} parent=1 // pred_check
      %p391 = pneg %p51
    $region51: #{tpu_custom_call.1} parent=1 // pred_check_branch
      %393 = sbr.rel (%p391) target = $region53
    $region52: #{tpu_custom_call.1} parent=1 // pred_region
      %v394 = vld [vmem:[#allocation2] sm:$0xff]
      %v395 = vpack.c.bf16 %v394, %v394
      %v396 = vld [vmem:[#allocation3] sm:$0xf]
      %v397 = vld [vmem:[#allocation3 + $0x4] sm:$0xf]
      %v398 = vld [vmem:[#allocation3 + $0x8] sm:$0xf]
      %v399 = vld [vmem:[#allocation3 + $0xc] sm:$0xf]
      %v400 = vld [vmem:[#allocation3 + $0x10] sm:$0xf]
      %v401 = vld [vmem:[#allocation3 + $0x14] sm:$0xf]
      %v402 = vld [vmem:[#allocation3 + $0x18] sm:$0xf]
      %v403 = vld [vmem:[#allocation3 + $0x1c] sm:$0xf]
      %v404 = vld [vmem:[#allocation3 + $0x20] sm:$0xf]
      %v405 = vld [vmem:[#allocation3 + $0x24] sm:$0xf]
      %v406 = vld [vmem:[#allocation3 + $0x28] sm:$0xf]
      %v407 = vld [vmem:[#allocation3 + $0x2c] sm:$0xf]
      %v408 = vld [vmem:[#allocation3 + $0x30] sm:$0xf]
      %v409 = vld [vmem:[#allocation3 + $0x34] sm:$0xf]
      %v410 = vld [vmem:[#allocation3 + $0x38] sm:$0xf]
      %v411 = vld [vmem:[#allocation3 + $0x3c] sm:$0xf]
      %v412 = vld [vmem:[%s5] sm:$0x1]
      %v413 = vlaneseq
      %v414 = vshrl.u32 %v413, 7
      %v415 = vsub.s32 0, %v414
      %v416 = vrot.slane %v412, %v415
      %v433 = vunpack.c.l.b16 %v396
      %v434 = vunpack.c.l.b16 %v397
      %v435 = vunpack.c.l.b16 %v398
      %v436 = vunpack.c.l.b16 %v399
      %v437 = vunpack.c.l.b16 %v400
      %v438 = vunpack.c.l.b16 %v401
      %v439 = vunpack.c.l.b16 %v402
      %v440 = vunpack.c.l.b16 %v403
      %v441 = vunpack.c.l.b16 %v404
      %v442 = vunpack.c.l.b16 %v405
      %v443 = vunpack.c.l.b16 %v406
      %v444 = vunpack.c.l.b16 %v407
      %v445 = vunpack.c.l.b16 %v408
      %v446 = vunpack.c.l.b16 %v409
      %v447 = vunpack.c.l.b16 %v410
      %v448 = vunpack.c.l.b16 %v411
      %v449 = vpack.c.b16 %v434, %v433
      %v450 = vpack.c.b16 %v436, %v435
      %v451 = vpack.c.b16 %v438, %v437
      %v452 = vpack.c.b16 %v440, %v439
      %v453 = vpack.c.b16 %v442, %v441
      %v454 = vpack.c.b16 %v444, %v443
      %v455 = vpack.c.b16 %v446, %v445
      %v456 = vpack.c.b16 %v448, %v447
      %465 = vmatprep.subr.bf16.mxu0 0
      %466 = vmatpush1.bf16.msra.mxu0 %v449
      %467 = vmatprep.subr.bf16.mxu0 0
      %468 = vmatpush1.bf16.msra.mxu0 %v450
      %469 = vmatprep.subr.bf16.mxu0 0
      %470 = vmatpush1.bf16.msra.mxu0 %v451
      %471 = vmatprep.subr.bf16.mxu0 0
      %472 = vmatpush1.bf16.msra.mxu0 %v452
      %473 = vmatprep.subr.bf16.mxu0 0
      %474 = vmatpush1.bf16.msra.mxu0 %v453
      %475 = vmatprep.subr.bf16.mxu0 0
      %476 = vmatpush1.bf16.msra.mxu0 %v454
      %477 = vmatprep.subr.bf16.mxu0 0
      %478 = vmatpush1.bf16.msra.mxu0 %v455
      %479 = vmatprep.subr.bf16.mxu0 0
      %480 = vmatpush1.bf16.msra.mxu0 %v456
      %481 = vmatprep.subr.bf16.mxu0 0
      %482 = vmatpush1.bf16.msra.mxu0 0
      %483 = vmatprep.subr.bf16.mxu0 0
      %484 = vmatpush1.bf16.msra.mxu0 0
      %485 = vmatprep.subr.bf16.mxu0 0
      %486 = vmatpush1.bf16.msra.mxu0 0
      %487 = vmatprep.subr.bf16.mxu0 0
      %488 = vmatpush1.bf16.msra.mxu0 0
      %489 = vmatprep.subr.bf16.mxu0 0
      %490 = vmatpush1.bf16.msra.mxu0 0
      %491 = vmatprep.subr.bf16.mxu0 0
      %492 = vmatpush1.bf16.msra.mxu0 0
      %493 = vmatprep.subr.bf16.mxu0 0
      %494 = vmatpush1.bf16.msra.mxu0 0
      %495 = vmatprep.subr.bf16.mxu0 0
      %496 = vmatpush1.bf16.msra.mxu0 0
      %497 = vmatprep.mubr.bf16.mxu0 0
      %498 = vmatmul.mubr.bf16.gmra.mrb[0].mxu0 %v395
      %v499 = vpop.f32.mrb[0].mxu0
      %v500 = vadd.f32 %v416, %v499
      %v501 = vpop.f32.mrb[0].mxu0
      %v502 = vpop.f32.mrb[0].mxu0
      %v503 = vpop.f32.mrb[0].mxu0
      %504 = vdwg.mxu0
      %vm505 = vcmp.ge.f32.partialorder %v500, 0.0
      %v506 = vmul.f32 %v500, 0.01
      %v507 = vsel %vm505, %v500, %v506
      %v508 = vld [vmem:[%s6] sm:$0x1]
      %v509 = vlaneseq
      %v510 = vshrl.u32 %v509, 7
      %v511 = vsub.s32 0, %v510
      %v512 = vrot.slane %v508, %v511
      %v513 = vmul.f32 %v507, %v512
      %v514 = vld [vmem:[%s7] sm:$0x1]
      %v515 = vlaneseq
      %v516 = vshrl.u32 %v515, 7
      %v517 = vsub.s32 0, %v516
      %v518 = vrot.slane %v514, %v517
      %v519 = vadd.f32 %v513, %v518
      %v520 = vpack.c.bf16 %v519, %v519
      %s521 = scalar_lea.vmem [#allocation3], 64
      %v522 = vld [vmem:[%s521] sm:$0xf]
      %v523 = vld [vmem:[%s521 + $0x4] sm:$0xf]
      %v524 = vld [vmem:[%s521 + $0x8] sm:$0xf]
      %v525 = vld [vmem:[%s521 + $0xc] sm:$0xf]
      %v526 = vld [vmem:[%s521 + $0x10] sm:$0xf]
      %v527 = vld [vmem:[%s521 + $0x14] sm:$0xf]
      %v528 = vld [vmem:[%s521 + $0x18] sm:$0xf]
      %v529 = vld [vmem:[%s521 + $0x1c] sm:$0xf]
      %v530 = vld [vmem:[%s521 + $0x20] sm:$0xf]
      %v531 = vld [vmem:[%s521 + $0x24] sm:$0xf]
      %v532 = vld [vmem:[%s521 + $0x28] sm:$0xf]
      %v533 = vld [vmem:[%s521 + $0x2c] sm:$0xf]
      %v534 = vld [vmem:[%s521 + $0x30] sm:$0xf]
      %v535 = vld [vmem:[%s521 + $0x34] sm:$0xf]
      %v536 = vld [vmem:[%s521 + $0x38] sm:$0xf]
      %v537 = vld [vmem:[%s521 + $0x3c] sm:$0xf]
      %v538 = vld [vmem:[%s5 + $0x1] sm:$0x1]
      %v539 = vlaneseq
      %v540 = vshrl.u32 %v539, 7
      %v541 = vsub.s32 0, %v540
      %v542 = vrot.slane %v538, %v541
      %v559 = vunpack.c.l.b16 %v522
      %v560 = vunpack.c.l.b16 %v523
      %v561 = vunpack.c.l.b16 %v524
      %v562 = vunpack.c.l.b16 %v525
      %v563 = vunpack.c.l.b16 %v526
      %v564 = vunpack.c.l.b16 %v527
      %v565 = vunpack.c.l.b16 %v528
      %v566 = vunpack.c.l.b16 %v529
      %v567 = vunpack.c.l.b16 %v530
      %v568 = vunpack.c.l.b16 %v531
      %v569 = vunpack.c.l.b16 %v532
      %v570 = vunpack.c.l.b16 %v533
      %v571 = vunpack.c.l.b16 %v534
      %v572 = vunpack.c.l.b16 %v535
      %v573 = vunpack.c.l.b16 %v536
      %v574 = vunpack.c.l.b16 %v537
      %v575 = vpack.c.b16 %v560, %v559
      %v576 = vpack.c.b16 %v562, %v561
      %v577 = vpack.c.b16 %v564, %v563
      %v578 = vpack.c.b16 %v566, %v565
      %v579 = vpack.c.b16 %v568, %v567
      %v580 = vpack.c.b16 %v570, %v569
      %v581 = vpack.c.b16 %v572, %v571
      %v582 = vpack.c.b16 %v574, %v573
      %591 = vmatprep.subr.bf16.mxu0 0
      %592 = vmatpush1.bf16.msra.mxu0 %v575
      %593 = vmatprep.subr.bf16.mxu0 0
      %594 = vmatpush1.bf16.msra.mxu0 %v576
      %595 = vmatprep.subr.bf16.mxu0 0
      %596 = vmatpush1.bf16.msra.mxu0 %v577
      %597 = vmatprep.subr.bf16.mxu0 0
      %598 = vmatpush1.bf16.msra.mxu0 %v578
      %599 = vmatprep.subr.bf16.mxu0 0
      %600 = vmatpush1.bf16.msra.mxu0 %v579
      %601 = vmatprep.subr.bf16.mxu0 0
      %602 = vmatpush1.bf16.msra.mxu0 %v580
      %603 = vmatprep.subr.bf16.mxu0 0
      %604 = vmatpush1.bf16.msra.mxu0 %v581
      %605 = vmatprep.subr.bf16.mxu0 0
      %606 = vmatpush1.bf16.msra.mxu0 %v582
      %607 = vmatprep.subr.bf16.mxu0 0
      %608 = vmatpush1.bf16.msra.mxu0 0
      %609 = vmatprep.subr.bf16.mxu0 0
      %610 = vmatpush1.bf16.msra.mxu0 0
      %611 = vmatprep.subr.bf16.mxu0 0
      %612 = vmatpush1.bf16.msra.mxu0 0
      %613 = vmatprep.subr.bf16.mxu0 0
      %614 = vmatpush1.bf16.msra.mxu0 0
      %615 = vmatprep.subr.bf16.mxu0 0
      %616 = vmatpush1.bf16.msra.mxu0 0
      %617 = vmatprep.subr.bf16.mxu0 0
      %618 = vmatpush1.bf16.msra.mxu0 0
      %619 = vmatprep.subr.bf16.mxu0 0
      %620 = vmatpush1.bf16.msra.mxu0 0
      %621 = vmatprep.subr.bf16.mxu0 0
      %622 = vmatpush1.bf16.msra.mxu0 0
      %623 = vmatprep.mubr.bf16.mxu0 0
      %624 = vmatmul.mubr.bf16.gmra.mrb[0].mxu0 %v520
      %v625 = vpop.f32.mrb[0].mxu0
      %v626 = vadd.f32 %v542, %v625
      %v627 = vpop.f32.mrb[0].mxu0
      %v628 = vpop.f32.mrb[0].mxu0
      %v629 = vpop.f32.mrb[0].mxu0
      %630 = vdwg.mxu0
      %vm631 = vcmp.ge.f32.partialorder %v626, 0.0
      %v632 = vmul.f32 %v626, 0.01
      %v633 = vsel %vm631, %v626, %v632
      %v634 = vld [vmem:[%s6 + $0x1] sm:$0x1]
      %v635 = vlaneseq
      %v636 = vshrl.u32 %v635, 7
      %v637 = vsub.s32 0, %v636
      %v638 = vrot.slane %v634, %v637
      %v639 = vmul.f32 %v633, %v638
      %v640 = vld [vmem:[%s7 + $0x1] sm:$0x1]
      %v641 = vlaneseq
      %v642 = vshrl.u32 %v641, 7
      %v643 = vsub.s32 0, %v642
      %v644 = vrot.slane %v640, %v643
      %v645 = vadd.f32 %v639, %v644
      %v646 = vpack.c.bf16 %v645, %v645
      %s647 = scalar_lea.vmem [#allocation3], 128
      %v648 = vld [vmem:[%s647] sm:$0xf]
      %v649 = vld [vmem:[%s647 + $0x4] sm:$0xf]
      %v650 = vld [vmem:[%s647 + $0x8] sm:$0xf]
      %v651 = vld [vmem:[%s647 + $0xc] sm:$0xf]
      %v652 = vld [vmem:[%s647 + $0x10] sm:$0xf]
      %v653 = vld [vmem:[%s647 + $0x14] sm:$0xf]
      %v654 = vld [vmem:[%s647 + $0x18] sm:$0xf]
      %v655 = vld [vmem:[%s647 + $0x1c] sm:$0xf]
      %v656 = vld [vmem:[%s647 + $0x20] sm:$0xf]
      %v657 = vld [vmem:[%s647 + $0x24] sm:$0xf]
      %v658 = vld [vmem:[%s647 + $0x28] sm:$0xf]
      %v659 = vld [vmem:[%s647 + $0x2c] sm:$0xf]
      %v660 = vld [vmem:[%s647 + $0x30] sm:$0xf]
      %v661 = vld [vmem:[%s647 + $0x34] sm:$0xf]
      %v662 = vld [vmem:[%s647 + $0x38] sm:$0xf]
      %v663 = vld [vmem:[%s647 + $0x3c] sm:$0xf]
      %v664 = vld [vmem:[%s5 + $0x2] sm:$0x1]
      %v665 = vlaneseq
      %v666 = vshrl.u32 %v665, 7
      %v667 = vsub.s32 0, %v666
      %v668 = vrot.slane %v664, %v667
      %v685 = vunpack.c.l.b16 %v648
      %v686 = vunpack.c.l.b16 %v649
      %v687 = vunpack.c.l.b16 %v650
      %v688 = vunpack.c.l.b16 %v651
      %v689 = vunpack.c.l.b16 %v652
      %v690 = vunpack.c.l.b16 %v653
      %v691 = vunpack.c.l.b16 %v654
      %v692 = vunpack.c.l.b16 %v655
      %v693 = vunpack.c.l.b16 %v656
      %v694 = vunpack.c.l.b16 %v657
      %v695 = vunpack.c.l.b16 %v658
      %v696 = vunpack.c.l.b16 %v659
      %v697 = vunpack.c.l.b16 %v660
      %v698 = vunpack.c.l.b16 %v661
      %v699 = vunpack.c.l.b16 %v662
      %v700 = vunpack.c.l.b16 %v663
      %v701 = vpack.c.b16 %v686, %v685
      %v702 = vpack.c.b16 %v688, %v687
      %v703 = vpack.c.b16 %v690, %v689
      %v704 = vpack.c.b16 %v692, %v691
      %v705 = vpack.c.b16 %v694, %v693
      %v706 = vpack.c.b16 %v696, %v695
      %v707 = vpack.c.b16 %v698, %v697
      %v708 = vpack.c.b16 %v700, %v699
      %717 = vmatprep.subr.bf16.mxu0 0
      %718 = vmatpush1.bf16.msra.mxu0 %v701
      %719 = vmatprep.subr.bf16.mxu0 0
      %720 = vmatpush1.bf16.msra.mxu0 %v702
      %721 = vmatprep.subr.bf16.mxu0 0
      %722 = vmatpush1.bf16.msra.mxu0 %v703
      %723 = vmatprep.subr.bf16.mxu0 0
      %724 = vmatpush1.bf16.msra.mxu0 %v704
      %725 = vmatprep.subr.bf16.mxu0 0
      %726 = vmatpush1.bf16.msra.mxu0 %v705
      %727 = vmatprep.subr.bf16.mxu0 0
      %728 = vmatpush1.bf16.msra.mxu0 %v706
      %729 = vmatprep.subr.bf16.mxu0 0
      %730 = vmatpush1.bf16.msra.mxu0 %v707
      %731 = vmatprep.subr.bf16.mxu0 0
      %732 = vmatpush1.bf16.msra.mxu0 %v708
      %733 = vmatprep.subr.bf16.mxu0 0
      %734 = vmatpush1.bf16.msra.mxu0 0
      %735 = vmatprep.subr.bf16.mxu0 0
      %736 = vmatpush1.bf16.msra.mxu0 0
      %737 = vmatprep.subr.bf16.mxu0 0
      %738 = vmatpush1.bf16.msra.mxu0 0
      %739 = vmatprep.subr.bf16.mxu0 0
      %740 = vmatpush1.bf16.msra.mxu0 0
      %741 = vmatprep.subr.bf16.mxu0 0
      %742 = vmatpush1.bf16.msra.mxu0 0
      %743 = vmatprep.subr.bf16.mxu0 0
      %744 = vmatpush1.bf16.msra.mxu0 0
      %745 = vmatprep.subr.bf16.mxu0 0
      %746 = vmatpush1.bf16.msra.mxu0 0
      %747 = vmatprep.subr.bf16.mxu0 0
      %748 = vmatpush1.bf16.msra.mxu0 0
      %749 = vmatprep.mubr.bf16.mxu0 0
      %750 = vmatmul.mubr.bf16.gmra.mrb[0].mxu0 %v646
      %v751 = vpop.f32.mrb[0].mxu0
      %v752 = vadd.f32 %v668, %v751
      %v753 = vpop.f32.mrb[0].mxu0
      %v754 = vpop.f32.mrb[0].mxu0
      %v755 = vpop.f32.mrb[0].mxu0
      %756 = vdwg.mxu0
      %vm757 = vcmp.ge.f32.partialorder %v752, 0.0
      %v758 = vmul.f32 %v752, 0.01
      %v759 = vsel %vm757, %v752, %v758
      %v760 = vld [vmem:[%s6 + $0x2] sm:$0x1]
      %v761 = vlaneseq
      %v762 = vshrl.u32 %v761, 7
      %v763 = vsub.s32 0, %v762
      %v764 = vrot.slane %v760, %v763
      %v765 = vmul.f32 %v759, %v764
      %v766 = vld [vmem:[%s7 + $0x2] sm:$0x1]
      %v767 = vlaneseq
      %v768 = vshrl.u32 %v767, 7
      %v769 = vsub.s32 0, %v768
      %v770 = vrot.slane %v766, %v769
      %v771 = vadd.f32 %v765, %v770
      %v772 = vpack.c.bf16 %v771, %v771
      %v773 = vld [vmem:[%s8] sm:$0xf]
      %v774 = vld [vmem:[%s8 + $0x4] sm:$0xf]
      %v775 = vld [vmem:[%s8 + $0x8] sm:$0xf]
      %v776 = vld [vmem:[%s8 + $0xc] sm:$0xf]
      %v777 = vld [vmem:[%s8 + $0x10] sm:$0xf]
      %v778 = vld [vmem:[%s8 + $0x14] sm:$0xf]
      %v779 = vld [vmem:[%s8 + $0x18] sm:$0xf]
      %v780 = vld [vmem:[%s8 + $0x1c] sm:$0xf]
      %v781 = vld [vmem:[%s8 + $0x20] sm:$0xf]
      %v782 = vld [vmem:[%s8 + $0x24] sm:$0xf]
      %v783 = vld [vmem:[%s8 + $0x28] sm:$0xf]
      %v784 = vld [vmem:[%s8 + $0x2c] sm:$0xf]
      %v785 = vld [vmem:[%s8 + $0x30] sm:$0xf]
      %v786 = vld [vmem:[%s8 + $0x34] sm:$0xf]
      %v787 = vld [vmem:[%s8 + $0x38] sm:$0xf]
      %v788 = vld [vmem:[%s8 + $0x3c] sm:$0xf]
      %v789 = vld [vmem:[%s9] sm:$0x1]
      %v791 = vlaneseq
      %v792 = vshrl.u32 %v791, 7
      %v793 = vsub.s32 0, %v792
      %v794 = vrot.slane %v789, %v793
      %v812 = vunpack.c.l.b16 %v773
      %v813 = vunpack.c.l.b16 %v774
      %v814 = vunpack.c.l.b16 %v775
      %v815 = vunpack.c.l.b16 %v776
      %v816 = vunpack.c.l.b16 %v777
      %v817 = vunpack.c.l.b16 %v778
      %v818 = vunpack.c.l.b16 %v779
      %v819 = vunpack.c.l.b16 %v780
      %v820 = vunpack.c.l.b16 %v781
      %v821 = vunpack.c.l.b16 %v782
      %v822 = vunpack.c.l.b16 %v783
      %v823 = vunpack.c.l.b16 %v784
      %v824 = vunpack.c.l.b16 %v785
      %v825 = vunpack.c.l.b16 %v786
      %v826 = vunpack.c.l.b16 %v787
      %v827 = vunpack.c.l.b16 %v788
      %v828 = vpack.c.b16 %v813, %v812
      %v829 = vpack.c.b16 %v815, %v814
      %v830 = vpack.c.b16 %v817, %v816
      %v831 = vpack.c.b16 %v819, %v818
      %v832 = vpack.c.b16 %v821, %v820
      %v833 = vpack.c.b16 %v823, %v822
      %v834 = vpack.c.b16 %v825, %v824
      %v835 = vpack.c.b16 %v827, %v826
      %844 = vmatprep.subr.bf16.mxu0 0
      %845 = vmatpush1.bf16.msra.mxu0 %v828
      %846 = vmatprep.subr.bf16.mxu0 0
      %847 = vmatpush1.bf16.msra.mxu0 %v829
      %848 = vmatprep.subr.bf16.mxu0 0
      %849 = vmatpush1.bf16.msra.mxu0 %v830
      %850 = vmatprep.subr.bf16.mxu0 0
      %851 = vmatpush1.bf16.msra.mxu0 %v831
      %852 = vmatprep.subr.bf16.mxu0 0
      %853 = vmatpush1.bf16.msra.mxu0 %v832
      %854 = vmatprep.subr.bf16.mxu0 0
      %855 = vmatpush1.bf16.msra.mxu0 %v833
      %856 = vmatprep.subr.bf16.mxu0 0
      %857 = vmatpush1.bf16.msra.mxu0 %v834
      %858 = vmatprep.subr.bf16.mxu0 0
      %859 = vmatpush1.bf16.msra.mxu0 %v835
      %860 = vmatprep.subr.bf16.mxu0 0
      %861 = vmatpush1.bf16.msra.mxu0 0
      %862 = vmatprep.subr.bf16.mxu0 0
      %863 = vmatpush1.bf16.msra.mxu0 0
      %864 = vmatprep.subr.bf16.mxu0 0
      %865 = vmatpush1.bf16.msra.mxu0 0
      %866 = vmatprep.subr.bf16.mxu0 0
      %867 = vmatpush1.bf16.msra.mxu0 0
      %868 = vmatprep.subr.bf16.mxu0 0
      %869 = vmatpush1.bf16.msra.mxu0 0
      %870 = vmatprep.subr.bf16.mxu0 0
      %871 = vmatpush1.bf16.msra.mxu0 0
      %872 = vmatprep.subr.bf16.mxu0 0
      %873 = vmatpush1.bf16.msra.mxu0 0
      %874 = vmatprep.subr.bf16.mxu0 0
      %875 = vmatpush1.bf16.msra.mxu0 0
      %876 = vmatprep.mubr.bf16.mxu0 0
      %877 = vmatmul.mubr.bf16.gmra.mrb[0].mxu0 %v772
      %v878 = vpop.f32.mrb[0].mxu0
      %v879 = vadd.f32 %v794, %v878
      %v880 = vpop.f32.mrb[0].mxu0
      %v881 = vpop.f32.mrb[0].mxu0
      %v882 = vpop.f32.mrb[0].mxu0
      %883 = vdwg.mxu0
      %884 = vst [vmem:[#allocation6] sm:$0xff] %v879
    $region53: #{tpu_custom_call.1} parent=1 // pred_fallthru
      _
    // Predicated region
    $region54: #{tpu_custom_call.1} parent=1 // pred_check
      _
    $region55: #{tpu_custom_call.1} parent=1 // pred_check_branch
      %886 = sbr.rel (0) target = $region57
    $region56: #{tpu_custom_call.1} parent=1 // pred_region
      %s888 = ssub.s32 128, 128
      %889 = vsyncadd [#allocation5], %s888
      %s891 = sshll.u32 [#allocation6], 4
      %s892 = int_to_ptr.vmem [resolvable:$true] %s891
      %894 = dma.vmem_to_hbm [thread:$0]  %s892, 128, %s10, [#allocation5]
    $region57: #{tpu_custom_call.1} parent=1 // pred_fallthru
      _
    // Predicated region
    $region58: #{tpu_custom_call.1} parent=1 // pred_check
      _
    $region59: #{tpu_custom_call.1} parent=1 // pred_check_branch
      %896 = sbr.rel (0) target = $region61
    $region60: #{tpu_custom_call.1} parent=1 // pred_region
      %897 = dma.done [#allocation5], 128
    $region61: #{tpu_custom_call.1} parent=1 // pred_fallthru
      _
    %898 = vsyncpa [#allocation4], 1
    %899 = vsyncpa [#allocation5], 1

</llo_original>
